<compile_context>
chip_gen: v7x
topology: tpu7x:2x2x1
jax: 0.10.0
libtpu: 0.0.40
codegen_flags: <defaults>
</compile_context>

<pallas_src>
import functools

import jax
import jax.numpy as jnp
import numpy as np
from jax import lax
from jax.experimental import pallas as pl
from jax.experimental.pallas import tpu as pltpu

_VMEM_LIMIT = 32 * 1024 * 1024  # fits the scoped VMEM budget on v5e/v6e/v7x


def _round_up(x, m):
    return (x + m - 1) // m * m


# ---------------------------------------------------------------------------
# Scatter kernels (channel-major / transposed):
#   out^T (C, TM) += x^T (C, TN) @ onehot^T (TN, TM)
# grid = (M_pad//TM, N_pad//TN); N is the trailing "arbitrary" reduction axis;
# accumulator lives in VMEM scratch (init @ n==0, finalize @ n==last).
# Per-N-tile min/max(inv) live in SMEM (scalar prefetch) and gate the compute.
# ---------------------------------------------------------------------------
def _scatter_sum_kernel(nmin_ref, nmax_ref, inv_ref, x_ref, out_ref, acc_ref,
                        *, block_m):
    n = pl.program_id(1)

    @pl.when(n == 0)
    def _():
        acc_ref[...] = jnp.zeros_like(acc_ref)

    m_base = pl.program_id(0) * block_m
    overlap = jnp.logical_and(nmax_ref[n] >= m_base,
                              nmin_ref[n] < m_base + block_m)

    @pl.when(overlap)
    def _():
        shifted = inv_ref[...] - m_base                              # (TN, 1)
        lane_ids = lax.broadcasted_iota(jnp.int32, (1, block_m), 1)  # (1, TM)
        oh = (shifted == lane_ids).astype(x_ref.dtype)               # (TN, TM)
        acc_ref[...] += jnp.dot(x_ref[...], oh,
                                preferred_element_type=jnp.float32)

    @pl.when(n == pl.num_programs(1) - 1)
    def _():
        out_ref[...] = acc_ref[...]


def _scatter_mean_kernel(nmin_ref, nmax_ref, inv_ref, x_ref, cnt_ref, out_ref,
                         acc_ref, *, block_m):
    n = pl.program_id(1)

    @pl.when(n == 0)
    def _():
        acc_ref[...] = jnp.zeros_like(acc_ref)

    m_base = pl.program_id(0) * block_m
    overlap = jnp.logical_and(nmax_ref[n] >= m_base,
                              nmin_ref[n] < m_base + block_m)

    @pl.when(overlap)
    def _():
        shifted = inv_ref[...] - m_base
        lane_ids = lax.broadcasted_iota(jnp.int32, (1, block_m), 1)
        oh = (shifted == lane_ids).astype(x_ref.dtype)
        acc_ref[...] += jnp.dot(x_ref[...], oh,
                                preferred_element_type=jnp.float32)

    @pl.when(n == pl.num_programs(1) - 1)
    def _():
        out_ref[...] = acc_ref[...] / jnp.maximum(cnt_ref[...], 1.0)


def scatter_by_voxel_t(inv_idx, x_t, num_voxels, counts_row=None, *,
                       block_m=1024, block_n=1024):
    """Per-voxel SUM (counts_row=None) or MEAN (counts_row=(1,M)) of x_t.

    x_t is channel-major (C, N); returns (C, num_voxels) float32.
    """
    C, N = x_t.shape
    TN = min(block_n, _round_up(N, 128))
    TM = min(block_m, _round_up(num_voxels, 128))
    M_pad = _round_up(num_voxels, TM)
    # v7x megacore: keep >= 2 M blocks so both TensorCores get work.
    if M_pad == TM and TM >= 256 and TM % 256 == 0:
        TM //= 2
    N_pad = _round_up(N, TN)

    inv_i32 = inv_idx.astype(jnp.int32)
    if N_pad != N:
        # Padded points get sentinel -1 (matches no voxel id >= 0).
        inv_i32 = jnp.pad(inv_i32, (0, N_pad - N), constant_values=-1)
        x_t = jnp.pad(x_t, ((0, 0), (0, N_pad - N)))
    inv_col = inv_i32.reshape(N_pad, 1)

    # Per-N-tile voxel-id range for tile skipping (scalar prefetch -> SMEM).
    tiles = inv_i32.reshape(N_pad // TN, TN)
    nmax = tiles.max(axis=1).astype(jnp.int32)
    nmin = jnp.min(jnp.where(tiles >= 0, tiles, jnp.int32(1 << 30)),
                   axis=1).astype(jnp.int32)

    in_specs = [
        pl.BlockSpec((TN, 1), lambda m, n, nmin, nmax: (n, 0)),   # inv column
        pl.BlockSpec((C, TN), lambda m, n, nmin, nmax: (0, n)),   # x^T tile
    ]
    args = [inv_col, x_t]
    if counts_row is None:
        kernel = functools.partial(_scatter_sum_kernel, block_m=TM)
    else:
        cnt = counts_row.astype(jnp.float32)
        if M_pad != num_voxels:
            cnt = jnp.pad(cnt, ((0, 0), (0, M_pad - num_voxels)))
        in_specs.append(pl.BlockSpec((1, TM), lambda m, n, nmin, nmax: (0, m)))
        args.append(cnt)
        kernel = functools.partial(_scatter_mean_kernel, block_m=TM)

    out = pl.pallas_call(
        kernel,
        out_shape=jax.ShapeDtypeStruct((C, M_pad), jnp.float32),
        grid_spec=pltpu.PrefetchScalarGridSpec(
            num_scalar_prefetch=2,
            grid=(M_pad // TM, N_pad // TN),
            in_specs=in_specs,
            out_specs=pl.BlockSpec((C, TM), lambda m, n, nmin, nmax: (0, m)),
            scratch_shapes=[pltpu.VMEM((C, TM), jnp.float32)],
        ),
        compiler_params=pltpu.CompilerParams(
            dimension_semantics=("parallel", "arbitrary"),
            vmem_limit_bytes=_VMEM_LIMIT),
    )(nmin, nmax, *args)
    return out[:, :num_voxels]


# ---------------------------------------------------------------------------
# PPmodel MLP (Linear -> ReLU -> Linear), channel-major / transposed:
#   out^T (C_out, TR) = W2^T @ relu(W1^T @ feat^T + b1^T) + b2^T
# Single packed input stream (in_ch+6, N); lane-dense output tiles.
# ---------------------------------------------------------------------------
def _mlp_kernel_t(feat_ref, w1t_ref, b1_ref, w2t_ref, b2_ref, out_ref):
    h = jnp.dot(w1t_ref[...], feat_ref[...],
                preferred_element_type=jnp.float32) + b1_ref[...]
    h = jnp.maximum(h, 0.0)                                   # ReLU(True)
    out_ref[...] = (jnp.dot(w2t_ref[...], h,
                            preferred_element_type=jnp.float32) + b2_ref[...])


def ppmodel_t(feat_t, w1, b1, w2, b2, *, block_rows=2048):
    """feat_t: (in_ch+6, N) channel-major.  Returns (out_channels, N) f32."""
    K, N = feat_t.shape
    H = w1.shape[1]
    C_out = w2.shape[1]
    TR = min(block_rows, _round_up(N, 128))
    N_pad = _round_up(N, TR)
    if N_pad != N:
        feat_t = jnp.pad(feat_t, ((0, 0), (0, N_pad - N)))

    w1t = w1.T.astype(jnp.float32)              # (H, K)
    b1t = b1.reshape(-1, 1).astype(jnp.float32)  # (H, 1)
    w2t = w2.T.astype(jnp.float32)              # (C_out, H)
    b2t = b2.reshape(-1, 1).astype(jnp.float32)  # (C_out, 1)

    out = pl.pallas_call(
        _mlp_kernel_t,
        out_shape=jax.ShapeDtypeStruct((C_out, N_pad), jnp.float32),
        grid_spec=pltpu.PrefetchScalarGridSpec(
            num_scalar_prefetch=0,
            grid=(N_pad // TR,),
            in_specs=[
                pl.BlockSpec((K, TR), lambda i: (0, i)),
                pl.BlockSpec((H, K), lambda i: (0, 0)),
                pl.BlockSpec((H, 1), lambda i: (0, 0)),
                pl.BlockSpec((C_out, H), lambda i: (0, 0)),
                pl.BlockSpec((C_out, 1), lambda i: (0, 0)),
            ],
            out_specs=pl.BlockSpec((C_out, TR), lambda i: (0, i)),
        ),
        compiler_params=pltpu.CompilerParams(
            dimension_semantics=("parallel",),
            vmem_limit_bytes=_VMEM_LIMIT),
    )(feat_t, w1t, b1t, w2t, b2t)
    return out[:, :N]


# ---------------------------------------------------------------------------
# Full forward pass (equivalent of voxel_3d_generator.forward)
# ---------------------------------------------------------------------------
def voxel_3d_generator_forward(points, grid_ind, inv_idx, num_voxels, params,
                               coors_range_xyz, spatial_shape):
    coors = jnp.asarray(coors_range_xyz, jnp.float32)          # (3, 2)
    spatial = jnp.asarray(spatial_shape, jnp.float32)          # (3,)
    mins = coors[:, 0]
    intervals = (coors[:, 1] - coors[:, 0]) / spatial

    points = points.astype(jnp.float32)
    N = points.shape[0]
    xyz_t = points[:, :3].T                                    # (3, N) glue

    # Pass 1: per-voxel xyz sums + counts in ONE matmul (ones row folds the
    # count into the contraction).  f32 for accuracy.
    x1_t = jnp.concatenate([xyz_t, jnp.ones((1, N), jnp.float32)], axis=0)
    sums_t = scatter_by_voxel_t(inv_idx, x1_t, num_voxels)     # (4, M) [Pallas]
    counts = sums_t[3:4]                                       # (1, M)
    pc_mean_vox_t = sums_t[:3] / jnp.maximum(counts, 1.0)      # (3, M) glue
    pc_mean_t = jnp.take(pc_mean_vox_t, inv_idx, axis=1)       # (3, N) gather glue
    vcent_t = (grid_ind.astype(jnp.float32) * intervals + mins).T  # (3, N)

    # prepare_input -> single packed channel-major stream (in_ch+6, N).
    feat_t = jnp.concatenate([points.T, xyz_t - pc_mean_t, xyz_t - vcent_t],
                             axis=0)

    # PPmodel MLP (Pallas, lane-dense tiles).
    pt_fea_t = ppmodel_t(feat_t, params['w1'], params['b1'],
                         params['w2'], params['b2'])           # (C_out, N)

    # Pass 2: per-voxel mean of MLP features, reusing counts from pass 1.
    # bf16 operands (one-hot exact, features ~1e-3 rel), f32 accumulation.
    features_t = scatter_by_voxel_t(inv_idx, pt_fea_t.astype(jnp.bfloat16),
                                    num_voxels, counts_row=counts)
    features = features_t.T                                    # (M, C_out)
    pt_fea = pt_fea_t.T                                        # (N, C_out)
    return features, pt_fea


if __name__ == "__main__":
    # Module config (small shapes)
    in_channels = 4
    out_channels = 32
    hidden = out_channels // 2
    coors_range_xyz = [[0.0, 1.0], [0.0, 1.0], [0.0, 1.0]]
    spatial_shape = [16, 16, 16]
    N = 64

    key = jax.random.PRNGKey(0)
    k_pts, k_int, k_w1, k_b1, k_w2, k_b2 = jax.random.split(key, 6)

    xyz = jax.random.uniform(k_pts, (N, 3), jnp.float32)
    intensity = jax.random.uniform(k_int, (N, 1), jnp.float32)
    points = jnp.concatenate([xyz, intensity], axis=1)         # (N, in_channels)

    # Host-side voxelization (input data prep; provided via data_dict in torch).
    mins_np = np.array([r[0] for r in coors_range_xyz], np.float32)
    maxs_np = np.array([r[1] for r in coors_range_xyz], np.float32)
    intervals_np = (maxs_np - mins_np) / np.array(spatial_shape, np.float32)
    grid_np = np.floor((np.asarray(xyz) - mins_np) / intervals_np).astype(np.int32)
    grid_np = np.clip(grid_np, 0, np.array(spatial_shape) - 1)
    uniq, inv = np.unique(grid_np, axis=0, return_inverse=True)
    num_voxels = int(uniq.shape[0])
    grid_ind = jnp.asarray(grid_np, jnp.int32)                 # full_coors[:, 1:]
    inv_idx = jnp.asarray(inv.astype(np.int32))                # coors_inv

    # Deterministic parameter init (Linear weights stored as (in, out) = W^T)
    w1 = jax.random.normal(k_w1, (in_channels + 6, hidden), jnp.float32) * 0.1
    b1 = jax.random.normal(k_b1, (1, hidden), jnp.float32) * 0.01
    w2 = jax.random.normal(k_w2, (hidden, out_channels), jnp.float32) * 0.1
    b2 = jax.random.normal(k_b2, (1, out_channels), jnp.float32) * 0.01
    params = dict(w1=w1, b1=b1, w2=w2, b2=b2)

    features, pt_fea = voxel_3d_generator_forward(
        points, grid_ind, inv_idx, num_voxels, params, coors_range_xyz,
        spatial_shape)
    features = jax.block_until_ready(features)
    pt_fea = jax.block_until_ready(pt_fea)

    # --- numpy reference check -------------------------------------------
    pts_np = np.asarray(points)
    cnt = np.zeros((num_voxels, 1), np.float32)
    summ = np.zeros((num_voxels, 3), np.float32)
    np.add.at(cnt, inv, 1.0)
    np.add.at(summ, inv, pts_np[:, :3])
    pc_mean_ref = (summ / np.maximum(cnt, 1.0))[inv]
    nor_pc = pts_np[:, :3] - pc_mean_ref
    vcent = grid_np.astype(np.float32) * intervals_np + mins_np
    c2p = pts_np[:, :3] - vcent
    feat = np.concatenate([pts_np, nor_pc, c2p], axis=1)
    h = np.maximum(feat @ np.asarray(w1) + np.asarray(b1), 0.0)
    pt_fea_ref = h @ np.asarray(w2) + np.asarray(b2)
    fsum = np.zeros((num_voxels, out_channels), np.float32)
    np.add.at(fsum, inv, pt_fea_ref)
    feat_ref = fsum / np.maximum(cnt, 1.0)

    assert features.shape == (num_voxels, out_channels)
    assert pt_fea.shape == (N, out_channels)
    assert np.allclose(np.asarray(pt_fea), pt_fea_ref, atol=2e-2, rtol=2e-2)
    assert np.allclose(np.asarray(features), feat_ref, atol=2e-2, rtol=2e-2)

    print("KERNEL_OK")
</pallas_src>

<mosaic_0001>
module attributes {stable_mosaic.version = 11 : i64} {
  func.func @_scatter_sum_kernel(%arg0: i32, %arg1: i32, %arg2: memref<1xi32, #tpu.memory_space<smem>>, %arg3: memref<1xi32, #tpu.memory_space<smem>>, %arg4: memref<128x1xi32, #tpu.memory_space<vmem>>, %arg5: memref<4x128xf32, #tpu.memory_space<vmem>>, %arg6: memref<4x128xf32, #tpu.memory_space<vmem>>, %arg7: memref<4x128xf32, #tpu.memory_space<vmem>>) attributes {dimension_semantics = [#tpu.dimension_semantics<parallel>, #tpu.dimension_semantics<arbitrary>], iteration_bounds = array<i64: 1, 1>, scalar_prefetch = 2 : i64, scratch_operands = 1 : i64, tpu.core_type = #tpu.core_type<tc>, window_params = [{transform_indices = @transform_0, window_bounds = array<i64: 128, 1>}, {transform_indices = @transform_1, window_bounds = array<i64: 4, 128>}, {transform_indices = @transform_2, window_bounds = array<i64: 4, 128>}]} {
    %c0_i32 = arith.constant 0 : i32
    %0 = arith.cmpi eq, %arg1, %c0_i32 : i32
    %1 = arith.extui %0 : i1 to i32
    %c0_i32_0 = arith.constant 0 : i32
    %2 = arith.cmpi ne, %1, %c0_i32_0 : i32
    scf.if %2 {
      %cst = arith.constant 0.000000e+00 : f32
      %17 = vector.broadcast %cst : f32 to vector<4x128xf32>
      %c0 = arith.constant 0 : index
      %c0_5 = arith.constant 0 : index
      %18 = vector.load %arg7[%c0, %c0_5] : memref<4x128xf32, #tpu.memory_space<vmem>>, vector<4x128xf32>
      tpu.vector_store %arg7[%c0, %c0_5], %17 {strides = array<i32>} : memref<4x128xf32, #tpu.memory_space<vmem>>, vector<4x128xf32>,
    } else {
    }
    %c128_i32 = arith.constant 128 : i32
    %3 = arith.muli %arg0, %c128_i32 : i32
    %4 = arith.index_cast %arg1 : i32 to index
    %5 = memref.load %arg3[%4] : memref<1xi32, #tpu.memory_space<smem>>
    %6 = arith.cmpi sge, %5, %3 : i32
    %7 = arith.index_cast %arg1 : i32 to index
    %8 = memref.load %arg2[%7] : memref<1xi32, #tpu.memory_space<smem>>
    %c128_i32_1 = arith.constant 128 : i32
    %9 = arith.addi %3, %c128_i32_1 : i32
    %10 = arith.cmpi slt, %8, %9 : i32
    %11 = arith.andi %6, %10 : i1
    %12 = arith.extui %11 : i1 to i32
    %c0_i32_2 = arith.constant 0 : i32
    %13 = arith.cmpi ne, %12, %c0_i32_2 : i32
    scf.if %13 {
      %c0 = arith.constant 0 : index
      %c0_5 = arith.constant 0 : index
      %17 = vector.load %arg4[%c0, %c0_5] : memref<128x1xi32, #tpu.memory_space<vmem>>, vector<128x1xi32>
      %18 = vector.broadcast %3 : i32 to vector<128x1xi32>
      %19 = arith.subi %17, %18 : vector<128x1xi32>
      %20 = tpu.iota {dimensions = array<i32: 1>} : vector<1x128xi32>
      %21 = vector.broadcast %19 : vector<128x1xi32> to vector<128x128xi32>
      %22 = vector.broadcast %20 : vector<1x128xi32> to vector<128x128xi32>
      %23 = arith.cmpi eq, %21, %22 : vector<128x128xi32>
      %24 = arith.extui %23 : vector<128x128xi1> to vector<128x128xi32>
      %25 = arith.sitofp %24 : vector<128x128xi32> to vector<128x128xf32>
      %c0_6 = arith.constant 0 : index
      %c0_7 = arith.constant 0 : index
      %26 = vector.load %arg7[%c0_6, %c0_7] : memref<4x128xf32, #tpu.memory_space<vmem>>, vector<4x128xf32>
      %c0_8 = arith.constant 0 : index
      %c0_9 = arith.constant 0 : index
      %27 = vector.load %arg5[%c0_8, %c0_9] : memref<4x128xf32, #tpu.memory_space<vmem>>, vector<4x128xf32>
      %cst = arith.constant dense<0.000000e+00> : vector<4x128xf32>
      %28 = tpu.matmul %27, %25, %cst {dimension_numbers = #tpu.dot_dimension_numbers<[1], [0], [0], [1], [0, 0, 1, 1], [], []>} : vector<4x128xf32>, vector<128x128xf32>, vector<4x128xf32> -> vector<4x128xf32>
      %29 = arith.addf %26, %28 : vector<4x128xf32>
      %c0_10 = arith.constant 0 : index
      %c0_11 = arith.constant 0 : index
      %30 = vector.load %arg7[%c0_10, %c0_11] : memref<4x128xf32, #tpu.memory_space<vmem>>, vector<4x128xf32>
      tpu.vector_store %arg7[%c0_10, %c0_11], %29 {strides = array<i32>} : memref<4x128xf32, #tpu.memory_space<vmem>>, vector<4x128xf32>,
    } else {
    }
    %c0_i32_3 = arith.constant 0 : i32
    %14 = arith.cmpi eq, %arg1, %c0_i32_3 : i32
    %15 = arith.extui %14 : i1 to i32
    %c0_i32_4 = arith.constant 0 : i32
    %16 = arith.cmpi ne, %15, %c0_i32_4 : i32
    scf.if %16 {
      %c0 = arith.constant 0 : index
      %c0_5 = arith.constant 0 : index
      %17 = vector.load %arg7[%c0, %c0_5] : memref<4x128xf32, #tpu.memory_space<vmem>>, vector<4x128xf32>
      %c0_6 = arith.constant 0 : index
      %c0_7 = arith.constant 0 : index
      %18 = vector.load %arg6[%c0_6, %c0_7] : memref<4x128xf32, #tpu.memory_space<vmem>>, vector<4x128xf32>
      tpu.vector_store %arg6[%c0_6, %c0_7], %17 {strides = array<i32>} : memref<4x128xf32, #tpu.memory_space<vmem>>, vector<4x128xf32>,
    } else {
    }
    return
  }
  func.func @transform_0(%arg0: i32, %arg1: i32, %arg2: memref<1xi32, #tpu.memory_space<smem>>, %arg3: memref<1xi32, #tpu.memory_space<smem>>) -> (i32, i32) {
    %c0_i32 = arith.constant 0 : i32
    %c0_i32_0 = arith.constant 0 : i32
    return %arg1, %c0_i32 : i32, i32
  }
  func.func @transform_1(%arg0: i32, %arg1: i32, %arg2: memref<1xi32, #tpu.memory_space<smem>>, %arg3: memref<1xi32, #tpu.memory_space<smem>>) -> (i32, i32) {
    %c0_i32 = arith.constant 0 : i32
    %c0_i32_0 = arith.constant 0 : i32
    return %c0_i32, %arg1 : i32, i32
  }
  func.func @transform_2(%arg0: i32, %arg1: i32, %arg2: memref<1xi32, #tpu.memory_space<smem>>, %arg3: memref<1xi32, #tpu.memory_space<smem>>) -> (i32, i32) {
    %c0_i32 = arith.constant 0 : i32
    %c0_i32_0 = arith.constant 0 : i32
    return %c0_i32, %arg0 : i32, i32
  }
}

</mosaic_0001>

<llo_original>
// kernel: tpu_custom_call.1
$region0: #{tpu_custom_call.1}
  #allocation0 [shape = 'u32[]', space=smem, size = 0x4, offset = 0x4, fixed_abs, tag = 'smem constant byte address 0x4 - core index']
  #allocation1 [shape = 'u32[144,128]{1,0:T(1,128)}', space=vmem, size = 0x12000, scoped, tag = 'internal scratch']
  #allocation2 [shape = 'f32[4,128]{1,0:T(4,128)}', space=vmem, size = 0x800, scoped, tag = 'scratch operand']
  #allocation3 [shape = 's32[1]{0}', space=sflag, size = 0x4, scoped, tag = 'scoped memory for tpu_custom_call.1']
  #allocation4 [shape = 's32[1]{0:T(128)S(6)}', space=smem, size = 0x200, scoped, tag = 'prefetched SMEM operand 0']
  #allocation5 [shape = 's32[1]{0:T(128)S(6)}', space=smem, size = 0x200, scoped, tag = 'prefetched SMEM operand 1']
  %s0 = inlined_call_operand.<no memory space> [shape: s32[1], index: 0, kind: input, shape index: {}]
  %s1 = inlined_call_operand.<no memory space> [shape: s32[1], index: 1, kind: input, shape index: {}]
  %s2 = inlined_call_operand.vmem [shape: s32[128,1], index: 2, kind: input, shape index: {}]
  %s3 = inlined_call_operand.vmem [shape: f32[4,128], index: 3, kind: input, shape index: {}]
  %s4 = inlined_call_operand.hbm [shape: f32[4,128], index: 4, kind: output, shape index: {}]
  %s5 = sld [smem:[#allocation0]]
  $region30: #{tpu_custom_call.1} parent=0
    _
  %s7 = ssub.s32 1, %s5
  %s8 = scalar_select 0, %s7, %s5
  %9 = sst [smem:[#allocation4]] %s0
  %10 = sst [smem:[#allocation5]] %s1
  $region1: #{tpu_custom_call.1} parent=0
    #allocation6 [shape = 'u8[2048]{0}', space=vmem, size = 0x800, scoped, tag = 'output window, operand 0, single buffered']
    #allocation7 [shape = 's32[1]{0}', space=sflag, size = 0x4, scoped, tag = 'scoped memory for tpu_custom_call.1']
    %11 = vsyncpa [#allocation7], 0
    // Predicated region
    $region2: #{tpu_custom_call.1} parent=1 // pred_check
      _
    $region3: #{tpu_custom_call.1} parent=1 // pred_check_branch
      %13 = sbr.rel (0) target = $region5
    $region4: #{tpu_custom_call.1} parent=1 // pred_region
      _
    $region5: #{tpu_custom_call.1} parent=1 // pred_fallthru
      _
    // Predicated region
    $region6: #{tpu_custom_call.1} parent=1 // pred_check
      _
    $region7: #{tpu_custom_call.1} parent=1 // pred_check_branch
      %15 = sbr.rel (0) target = $region9
    $region8: #{tpu_custom_call.1} parent=1 // pred_region
      _
    $region9: #{tpu_custom_call.1} parent=1 // pred_fallthru
      _
    %p16 = scmp.eq.s32.totalorder 0, 0
    // Predicated region
    $region10: #{tpu_custom_call.1} parent=1 // pred_check
      %p17 = pneg %p16
    $region11: #{tpu_custom_call.1} parent=1 // pred_check_branch
      %19 = sbr.rel (%p17) target = $region13
    $region12: #{tpu_custom_call.1} parent=1 // pred_region
      %20 = vst [vmem:[#allocation2] sm:$0xf] 0.0
    $region13: #{tpu_custom_call.1} parent=1 // pred_fallthru
      _
    %s21 = smul.u32 0, 128
    %s22 = sld [smem:[#allocation5]]
    %p23 = scmp.ge.s32.totalorder %s22, %s21
    %s24 = sld [smem:[#allocation4]]
    %s25 = sadd.s32 %s21, 128
    %p26 = scmp.lt.s32.totalorder %s24, %s25
    %p27 = pnand %p23, %p26
    %p28 = pneg %p27
    // Predicated region
    $region14: #{tpu_custom_call.1} parent=1 // pred_check
      _
    $region15: #{tpu_custom_call.1} parent=1 // pred_check_branch
      %30 = sbr.rel (%p27) target = $region17
    $region16: #{tpu_custom_call.1} parent=1 // pred_region
      %v31 = vld [vmem:[%s2] sm:$0xff]
      %v32 = vld [vmem:[%s2 + $0x8] sm:$0xff]
      %v33 = vld [vmem:[%s2 + $0x10] sm:$0xff]
      %v34 = vld [vmem:[%s2 + $0x18] sm:$0xff]
      %v35 = vld [vmem:[%s2 + $0x20] sm:$0xff]
      %v36 = vld [vmem:[%s2 + $0x28] sm:$0xff]
      %v37 = vld [vmem:[%s2 + $0x30] sm:$0xff]
      %v38 = vld [vmem:[%s2 + $0x38] sm:$0xff]
      %v39 = vld [vmem:[%s2 + $0x40] sm:$0xff]
      %v40 = vld [vmem:[%s2 + $0x48] sm:$0xff]
      %v41 = vld [vmem:[%s2 + $0x50] sm:$0xff]
      %v42 = vld [vmem:[%s2 + $0x58] sm:$0xff]
      %v43 = vld [vmem:[%s2 + $0x60] sm:$0xff]
      %v44 = vld [vmem:[%s2 + $0x68] sm:$0xff]
      %v45 = vld [vmem:[%s2 + $0x70] sm:$0xff]
      %v46 = vld [vmem:[%s2 + $0x78] sm:$0xff]
      %v47 = vstv %s21
      %v48 = vsub.s32 %v31, %v47
      %v49 = vsub.s32 %v32, %v47
      %v50 = vsub.s32 %v33, %v47
      %v51 = vsub.s32 %v34, %v47
      %v52 = vsub.s32 %v35, %v47
      %v53 = vsub.s32 %v36, %v47
      %v54 = vsub.s32 %v37, %v47
      %v55 = vsub.s32 %v38, %v47
      %v56 = vsub.s32 %v39, %v47
      %v57 = vsub.s32 %v40, %v47
      %v58 = vsub.s32 %v41, %v47
      %v59 = vsub.s32 %v42, %v47
      %v60 = vsub.s32 %v43, %v47
      %v61 = vsub.s32 %v44, %v47
      %v62 = vsub.s32 %v45, %v47
      %v63 = vsub.s32 %v46, %v47
      %v64 = vlaneseq
      %v65 = vand.u32 %v64, 127
      %66 = vset.pattern.permute.xlu0 0
      %67 = vperm.xlu0 %66, %v48
      %v68 = vpop.permute.xlu0 %67
      %69 = vset.pattern.permute.xlu0 0
      %70 = vperm.xlu0 %69, %v49
      %v71 = vpop.permute.xlu0 %70
      %72 = vset.pattern.permute.xlu0 0
      %73 = vperm.xlu0 %72, %v50
      %v74 = vpop.permute.xlu0 %73
      %75 = vset.pattern.permute.xlu0 0
      %76 = vperm.xlu0 %75, %v51
      %v77 = vpop.permute.xlu0 %76
      %78 = vset.pattern.permute.xlu0 0
      %79 = vperm.xlu0 %78, %v52
      %v80 = vpop.permute.xlu0 %79
      %81 = vset.pattern.permute.xlu0 0
      %82 = vperm.xlu0 %81, %v53
      %v83 = vpop.permute.xlu0 %82
      %84 = vset.pattern.permute.xlu0 0
      %85 = vperm.xlu0 %84, %v54
      %v86 = vpop.permute.xlu0 %85
      %87 = vset.pattern.permute.xlu0 0
      %88 = vperm.xlu0 %87, %v55
      %v89 = vpop.permute.xlu0 %88
      %90 = vset.pattern.permute.xlu0 0
      %91 = vperm.xlu0 %90, %v56
      %v92 = vpop.permute.xlu0 %91
      %93 = vset.pattern.permute.xlu0 0
      %94 = vperm.xlu0 %93, %v57
      %v95 = vpop.permute.xlu0 %94
      %96 = vset.pattern.permute.xlu0 0
      %97 = vperm.xlu0 %96, %v58
      %v98 = vpop.permute.xlu0 %97
      %99 = vset.pattern.permute.xlu0 0
      %100 = vperm.xlu0 %99, %v59
      %v101 = vpop.permute.xlu0 %100
      %102 = vset.pattern.permute.xlu0 0
      %103 = vperm.xlu0 %102, %v60
      %v104 = vpop.permute.xlu0 %103
      %105 = vset.pattern.permute.xlu0 0
      %106 = vperm.xlu0 %105, %v61
      %v107 = vpop.permute.xlu0 %106
      %108 = vset.pattern.permute.xlu0 0
      %109 = vperm.xlu0 %108, %v62
      %v110 = vpop.permute.xlu0 %109
      %111 = vset.pattern.permute.xlu0 0
      %112 = vperm.xlu0 %111, %v63
      %v113 = vpop.permute.xlu0 %112
      %vm114 = vcmp.eq.s32.totalorder %v68, %v65
      %vm115 = vcmp.eq.s32.totalorder %v71, %v65
      %vm116 = vcmp.eq.s32.totalorder %v74, %v65
      %vm117 = vcmp.eq.s32.totalorder %v77, %v65
      %vm118 = vcmp.eq.s32.totalorder %v80, %v65
      %vm119 = vcmp.eq.s32.totalorder %v83, %v65
      %vm120 = vcmp.eq.s32.totalorder %v86, %v65
      %vm121 = vcmp.eq.s32.totalorder %v89, %v65
      %vm122 = vcmp.eq.s32.totalorder %v92, %v65
      %vm123 = vcmp.eq.s32.totalorder %v95, %v65
      %vm124 = vcmp.eq.s32.totalorder %v98, %v65
      %vm125 = vcmp.eq.s32.totalorder %v101, %v65
      %vm126 = vcmp.eq.s32.totalorder %v104, %v65
      %vm127 = vcmp.eq.s32.totalorder %v107, %v65
      %vm128 = vcmp.eq.s32.totalorder %v110, %v65
      %vm129 = vcmp.eq.s32.totalorder %v113, %v65
      %v130 = vsel %vm114, 1, 0
      %v131 = vsel %vm115, 1, 0
      %v132 = vsel %vm116, 1, 0
      %v133 = vsel %vm117, 1, 0
      %v134 = vsel %vm118, 1, 0
      %v135 = vsel %vm119, 1, 0
      %v136 = vsel %vm120, 1, 0
      %v137 = vsel %vm121, 1, 0
      %v138 = vsel %vm122, 1, 0
      %v139 = vsel %vm123, 1, 0
      %v140 = vsel %vm124, 1, 0
      %v141 = vsel %vm125, 1, 0
      %v142 = vsel %vm126, 1, 0
      %v143 = vsel %vm127, 1, 0
      %v144 = vsel %vm128, 1, 0
      %v145 = vsel %vm129, 1, 0
      %v146 = vcvt.s32.f32 %v130
      %v147 = vcvt.s32.f32 %v131
      %v148 = vcvt.s32.f32 %v132
      %v149 = vcvt.s32.f32 %v133
      %v150 = vcvt.s32.f32 %v134
      %v151 = vcvt.s32.f32 %v135
      %v152 = vcvt.s32.f32 %v136
      %v153 = vcvt.s32.f32 %v137
      %v154 = vcvt.s32.f32 %v138
      %v155 = vcvt.s32.f32 %v139
      %v156 = vcvt.s32.f32 %v140
      %v157 = vcvt.s32.f32 %v141
      %v158 = vcvt.s32.f32 %v142
      %v159 = vcvt.s32.f32 %v143
      %v160 = vcvt.s32.f32 %v144
      %v161 = vcvt.s32.f32 %v145
      %v162 = vld [vmem:[#allocation2] sm:$0xf]
      %v163 = vld [vmem:[%s3] sm:$0xf]
      %164 = vmatprep.subr.mxu0 0.0
      %165 = vmatpush1.msra.mxu0 %v146
      %166 = vmatprep.subr.mxu0 0.0
      %167 = vmatpush1.msra.mxu0 %v147
      %168 = vmatprep.subr.mxu0 0.0
      %169 = vmatpush1.msra.mxu0 %v148
      %170 = vmatprep.subr.mxu0 0.0
      %171 = vmatpush1.msra.mxu0 %v149
      %172 = vmatprep.subr.mxu0 0.0
      %173 = vmatpush1.msra.mxu0 %v150
      %174 = vmatprep.subr.mxu0 0.0
      %175 = vmatpush1.msra.mxu0 %v151
      %176 = vmatprep.subr.mxu0 0.0
      %177 = vmatpush1.msra.mxu0 %v152
      %178 = vmatprep.subr.mxu0 0.0
      %179 = vmatpush1.msra.mxu0 %v153
      %180 = vmatprep.subr.mxu0 0.0
      %181 = vmatpush1.msra.mxu0 %v154
      %182 = vmatprep.subr.mxu0 0.0
      %183 = vmatpush1.msra.mxu0 %v155
      %184 = vmatprep.subr.mxu0 0.0
      %185 = vmatpush1.msra.mxu0 %v156
      %186 = vmatprep.subr.mxu0 0.0
      %187 = vmatpush1.msra.mxu0 %v157
      %188 = vmatprep.subr.mxu0 0.0
      %189 = vmatpush1.msra.mxu0 %v158
      %190 = vmatprep.subr.mxu0 0.0
      %191 = vmatpush1.msra.mxu0 %v159
      %192 = vmatprep.subr.mxu0 0.0
      %193 = vmatpush1.msra.mxu0 %v160
      %194 = vmatprep.subr.mxu0 0.0
      %195 = vmatpush1.msra.mxu0 %v161
      %196 = vmatprep.subr.mxu0 0.0
      %197 = vmatpush1.msra.mxu0 0.0
      %198 = vmatprep.subr.mxu0 0.0
      %199 = vmatpush1.msra.mxu0 0.0
      %200 = vmatprep.subr.mxu0 0.0
      %201 = vmatpush1.msra.mxu0 0.0
      %202 = vmatprep.subr.mxu0 0.0
      %203 = vmatpush1.msra.mxu0 0.0
      %204 = vmatprep.subr.mxu0 0.0
      %205 = vmatpush1.msra.mxu0 0.0
      %206 = vmatprep.subr.mxu0 0.0
      %207 = vmatpush1.msra.mxu0 0.0
      %208 = vmatprep.subr.mxu0 0.0
      %209 = vmatpush1.msra.mxu0 0.0
      %210 = vmatprep.subr.mxu0 0.0
      %211 = vmatpush1.msra.mxu0 0.0
      %212 = vmatprep.subr.mxu0 0.0
      %213 = vmatpush1.msra.mxu0 0.0
      %214 = vmatprep.subr.mxu0 0.0
      %215 = vmatpush1.msra.mxu0 0.0
      %216 = vmatprep.subr.mxu0 0.0
      %217 = vmatpush1.msra.mxu0 0.0
      %218 = vmatprep.subr.mxu0 0.0
      %219 = vmatpush1.msra.mxu0 0.0
      %220 = vmatprep.subr.mxu0 0.0
      %221 = vmatpush1.msra.mxu0 0.0
      %222 = vmatprep.subr.mxu0 0.0
      %223 = vmatpush1.msra.mxu0 0.0
      %224 = vmatprep.subr.mxu0 0.0
      %225 = vmatpush1.msra.mxu0 0.0
      %226 = vmatprep.subr.mxu0 0.0
      %227 = vmatpush1.msra.mxu0 0.0
      %228 = vmatprep.mubr.f32.mxu0 0.0
      %229 = vmatmul.mubr.f32.gmra.mrb[0].mxu0 %v163
      %v230 = vpop.f32.mrb[0].mxu0
      %v231 = vadd.f32 0.0, %v230
      %v232 = vpop.f32.mrb[0].mxu0
      %233 = vdwg.mxu0
      %v234 = vadd.f32 %v162, %v231
      %235 = vst [vmem:[#allocation2] sm:$0xf] %v234
    $region17: #{tpu_custom_call.1} parent=1 // pred_fallthru
      _
    // Predicated region
    $region18: #{tpu_custom_call.1} parent=1 // pred_check
      %p236 = pneg %p16
    $region19: #{tpu_custom_call.1} parent=1 // pred_check_branch
      %238 = sbr.rel (%p236) target = $region21
    $region20: #{tpu_custom_call.1} parent=1 // pred_region
      %v239 = vld [vmem:[#allocation2] sm:$0xf]
      %240 = vst [vmem:[#allocation6] sm:$0xf] %v239
    $region21: #{tpu_custom_call.1} parent=1 // pred_fallthru
      _
    // Predicated region
    $region22: #{tpu_custom_call.1} parent=1 // pred_check
      _
    $region23: #{tpu_custom_call.1} parent=1 // pred_check_branch
      %242 = sbr.rel (0) target = $region25
    $region24: #{tpu_custom_call.1} parent=1 // pred_region
      %s244 = ssub.s32 64, 64
      %245 = vsyncadd [#allocation7], %s244
      %s247 = sshll.u32 [#allocation6], 4
      %s248 = int_to_ptr.vmem [resolvable:$true] %s247
      %250 = dma.vmem_to_hbm [thread:$0]  %s248, 64, %s4, [#allocation7]
    $region25: #{tpu_custom_call.1} parent=1 // pred_fallthru
      _
    // Predicated region
    $region26: #{tpu_custom_call.1} parent=1 // pred_check
      _
    $region27: #{tpu_custom_call.1} parent=1 // pred_check_branch
      %252 = sbr.rel (0) target = $region29
    $region28: #{tpu_custom_call.1} parent=1 // pred_region
      %253 = dma.done [#allocation7], 64
    $region29: #{tpu_custom_call.1} parent=1 // pred_fallthru
      _
    %254 = vsyncpa [#allocation7], 1

</llo_original>
